<compile_context>
chip_gen: v5e
topology: v5e:2x2
jax: 0.10.0
libtpu: 0.0.40
codegen_flags: <defaults>
</compile_context>

<pallas_src>
import functools

import jax
import jax.numpy as jnp
from jax import lax
from jax.experimental import pallas as pl
from jax.experimental.pallas import tpu as pltpu

EPS = 1e-5


def _vmem_limit_bytes():
    try:
        cap = pltpu.get_tpu_info().vmem_capacity_bytes
    except Exception:
        cap = 64 * 1024 * 1024
    # ~56 MiB on v7x (64 MiB physical), 100 MiB cap on v5e/v6e (128 MiB).
    return int(min(cap * 7 // 8, 100 * 1024 * 1024))


VMEM_LIMIT = _vmem_limit_bytes()


def _params(*sem):
    return pltpu.CompilerParams(dimension_semantics=sem,
                                vmem_limit_bytes=VMEM_LIMIT)


def _pick(n, candidates):
    """Largest candidate tile that divides n, else the full dim (always legal)."""
    for c in candidates:
        if n % c == 0:
            return c
    return n


# --------------------------------------------------------------------------
# Fused RMSNorm + matmul.  Grid (M//tm, N//tn), N inner "arbitrary"; the
# normalized activations are computed once per row tile (j == 0) and cached
# in a bf16 VMEM scratch, then reused for every N tile.
# --------------------------------------------------------------------------
def _rmsnorm_matmul_kernel(x_ref, g_ref, w_ref, o_ref, xn_sc):
    @pl.when(pl.program_id(1) == 0)
    def _():
        x = x_ref[...].astype(jnp.float32)
        var = jnp.mean(x * x, axis=-1, keepdims=True)
        xn = x * lax.rsqrt(var + EPS) * g_ref[...].astype(jnp.float32)
        xn_sc[...] = xn.astype(xn_sc.dtype)

    o_ref[...] = jnp.dot(xn_sc[...], w_ref[...],
                         preferred_element_type=jnp.float32).astype(o_ref.dtype)


def rmsnorm_matmul(x, g, w, out_dtype=jnp.bfloat16):
    M, K = x.shape
    _, N = w.shape
    tm = _pick(M, (512, 256, 128, 64, 32, 16, 8))
    tn = _pick(N, (512, 256, 128))
    return pl.pallas_call(
        _rmsnorm_matmul_kernel,
        out_shape=jax.ShapeDtypeStruct((M, N), out_dtype),
        grid=(M // tm, N // tn),
        in_specs=[pl.BlockSpec((tm, K), lambda i, j: (i, 0)),
                  pl.BlockSpec((1, K), lambda i, j: (0, 0)),
                  pl.BlockSpec((K, tn), lambda i, j: (0, j))],
        out_specs=pl.BlockSpec((tm, tn), lambda i, j: (i, j)),
        scratch_shapes=[pltpu.VMEM((tm, K), jnp.bfloat16)],
        compiler_params=_params("parallel", "arbitrary"),
    )(x, g.reshape(1, K), w)


# --------------------------------------------------------------------------
# Fused RMSNorm + MoE gate projection: emits the normalized activations (for
# the experts) and the tiny (T, n_experts) gate logits in one pass.
# --------------------------------------------------------------------------
def _rmsnorm_gate_kernel(x_ref, g_ref, wg_ref, hn_ref, gl_ref):
    x = x_ref[...].astype(jnp.float32)
    var = jnp.mean(x * x, axis=-1, keepdims=True)
    xn = (x * lax.rsqrt(var + EPS) * g_ref[...].astype(jnp.float32)).astype(jnp.bfloat16)
    hn_ref[...] = xn
    gl_ref[...] = jnp.dot(xn, wg_ref[...], preferred_element_type=jnp.float32)


def rmsnorm_gate(x, g, wg):
    T, D = x.shape
    E = wg.shape[1]
    tm = _pick(T, (512, 256, 128, 64, 32, 16, 8))
    return pl.pallas_call(
        _rmsnorm_gate_kernel,
        out_shape=(jax.ShapeDtypeStruct((T, D), jnp.bfloat16),
                   jax.ShapeDtypeStruct((T, E), jnp.float32)),
        grid=(T // tm,),
        in_specs=[pl.BlockSpec((tm, D), lambda i: (i, 0)),
                  pl.BlockSpec((1, D), lambda i: (0, 0)),
                  pl.BlockSpec((D, E), lambda i: (0, 0))],
        out_specs=[pl.BlockSpec((tm, D), lambda i: (i, 0)),
                   pl.BlockSpec((tm, E), lambda i: (i, 0))],
        compiler_params=_params("parallel"),
    )(x, g.reshape(1, D), wg)


# --------------------------------------------------------------------------
# Tiled matmul with the residual add fused into the finalize step.
# --------------------------------------------------------------------------
def _matmul_res_kernel(a_ref, b_ref, r_ref, o_ref, acc_ref):
    @pl.when(pl.program_id(2) == 0)
    def _():
        acc_ref[...] = jnp.zeros_like(acc_ref)

    acc_ref[...] += jnp.dot(a_ref[...], b_ref[...],
                            preferred_element_type=jnp.float32)

    @pl.when(pl.program_id(2) == pl.num_programs(2) - 1)
    def _():
        o_ref[...] = (acc_ref[...] + r_ref[...].astype(jnp.float32)).astype(o_ref.dtype)


def matmul_residual(a, b, res, out_dtype=jnp.bfloat16):
    M, K = a.shape
    _, N = b.shape
    tm = _pick(M, (512, 256, 128, 64, 32, 16, 8))
    tn = _pick(N, (512, 256, 128))
    tk = _pick(K, (512, 256, 128))
    return pl.pallas_call(
        _matmul_res_kernel,
        out_shape=jax.ShapeDtypeStruct((M, N), out_dtype),
        grid=(M // tm, N // tn, K // tk),
        in_specs=[pl.BlockSpec((tm, tk), lambda i, j, k: (i, k)),
                  pl.BlockSpec((tk, tn), lambda i, j, k: (k, j)),
                  pl.BlockSpec((tm, tn), lambda i, j, k: (i, j))],
        out_specs=pl.BlockSpec((tm, tn), lambda i, j, k: (i, j)),
        scratch_shapes=[pltpu.VMEM((tm, tn), jnp.float32)],
        compiler_params=_params("parallel", "parallel", "arbitrary"),
    )(a, b, res)


# --------------------------------------------------------------------------
# GQA flash attention:
#   grid (B, KVH, q-tile, kv-tile); q-tiles "parallel", kv innermost
#   "arbitrary".  Causal mask generated in-kernel; RoPE via pltpu.roll with
#   the rotate-half sign folded into the sin table; rotated+scaled Q cached
#   per (b, kv-head, q-tile); fully-masked KV tiles skip compute.
# --------------------------------------------------------------------------
def _attention_kernel(q_ref, k_ref, v_ref, cosq_ref, sinq_ref, cosk_ref,
                      sink_ref, o_ref, q_sc, m_sc, l_sc, acc_sc, *,
                      scale, s_len):
    qt = pl.program_id(2)
    kt = pl.program_id(3)
    tq, hd = q_ref.shape
    tkv = k_ref.shape[0]
    half = hd // 2

    def rope(x_f32, cos_ref, sin_ref):
        # rotate_half(x) * sin == roll(x, half) * (sign * sin); sign is folded
        # into the sin table by the caller, so this is XLU roll + VPU mul/add.
        return (x_f32 * cos_ref[...].astype(jnp.float32)
                + pltpu.roll(x_f32, half, axis=1)
                * sin_ref[...].astype(jnp.float32))

    @pl.when(kt == 0)
    def _():
        q = q_ref[...].astype(jnp.float32)
        q_sc[...] = (rope(q, cosq_ref, sinq_ref) * scale).astype(q_sc.dtype)
        m_sc[...] = jnp.full(m_sc.shape, -jnp.inf, m_sc.dtype)
        l_sc[...] = jnp.zeros(l_sc.shape, l_sc.dtype)
        acc_sc[...] = jnp.zeros(acc_sc.shape, acc_sc.dtype)

    # query / kv positions of this tile (query axis is the G*S folded axis,
    # tq divides S so the tile lies within a single head's sequence range)
    q_base = (qt % (s_len // tq)) * tq
    kv_base = kt * tkv

    @pl.when(kv_base <= q_base + tq - 1)   # skip KV tiles above the diagonal
    def _():
        k = k_ref[...].astype(jnp.float32)
        k_rope = rope(k, cosk_ref, sink_ref).astype(jnp.bfloat16)

        # scores [tq, tkv] = q @ k.T
        s = lax.dot_general(q_sc[...], k_rope, (((1,), (1,)), ((), ())),
                            preferred_element_type=jnp.float32)

        q_pos = q_base + lax.broadcasted_iota(jnp.int32, (tq, tkv), 0)
        kv_pos = kv_base + lax.broadcasted_iota(jnp.int32, (tq, tkv), 1)
        s = jnp.where(kv_pos <= q_pos, s, -1e9)

        # online softmax
        m_new = jnp.maximum(m_sc[...], jnp.max(s, axis=-1, keepdims=True))
        alpha = jnp.exp(m_sc[...] - m_new)
        p = jnp.exp(s - m_new)
        l_sc[...] = alpha * l_sc[...] + jnp.sum(p, axis=-1, keepdims=True)
        acc_sc[...] = alpha * acc_sc[...] + jnp.dot(
            p.astype(jnp.bfloat16), v_ref[...], preferred_element_type=jnp.float32)
        m_sc[...] = m_new

    @pl.when(kt == pl.num_programs(3) - 1)
    def _():
        o_ref[...] = (acc_sc[...]
                      * pl.reciprocal(l_sc[...], approx=True)).astype(o_ref.dtype)


def attention(qg, k, v, cos_q, sin_q, cos_k, sin_k, s_len):
    """qg: [B, KVH, G*S, hd] (query group folded into sublanes); k/v: [B, KVH, S, hd]."""
    B, KVH, GS, hd = qg.shape
    tq = _pick(s_len, (256, 128, 64, 32, 16, 8))
    tkv = _pick(s_len, (512, 256, 128, 64, 32, 16, 8))

    kernel = functools.partial(_attention_kernel, scale=1.0 / (hd ** 0.5),
                               s_len=s_len)
    return pl.pallas_call(
        kernel,
        out_shape=jax.ShapeDtypeStruct((B, KVH, GS, hd), jnp.bfloat16),
        grid=(B, KVH, GS // tq, s_len // tkv),
        in_specs=[
            pl.BlockSpec((None, None, tq, hd), lambda b, h, i, j: (b, h, i, 0)),
            pl.BlockSpec((None, None, tkv, hd), lambda b, h, i, j: (b, h, j, 0)),
            pl.BlockSpec((None, None, tkv, hd), lambda b, h, i, j: (b, h, j, 0)),
            pl.BlockSpec((tq, hd), lambda b, h, i, j: (i, 0)),   # cos (Q, group-tiled)
            pl.BlockSpec((tq, hd), lambda b, h, i, j: (i, 0)),   # sin (Q, group-tiled)
            pl.BlockSpec((tkv, hd), lambda b, h, i, j: (j, 0)),  # cos (K)
            pl.BlockSpec((tkv, hd), lambda b, h, i, j: (j, 0)),  # sin (K)
        ],
        out_specs=pl.BlockSpec((None, None, tq, hd), lambda b, h, i, j: (b, h, i, 0)),
        scratch_shapes=[
            pltpu.VMEM((tq, hd), jnp.bfloat16),   # rotated + scaled Q
            pltpu.VMEM((tq, 1), jnp.float32),     # running max
            pltpu.VMEM((tq, 1), jnp.float32),     # running sum
            pltpu.VMEM((tq, hd), jnp.float32),    # output accumulator
        ],
        compiler_params=_params("parallel", "parallel", "parallel", "arbitrary"),
    )(qg, k, v, cos_q, sin_q, cos_k, sin_k)


# --------------------------------------------------------------------------
# MoE: token-tiled, dense top-2 (zero weight = no contribution), residual
# fused into the finalize; routing weight applied before the w2 matmul.
# --------------------------------------------------------------------------
def _moe_kernel(x_ref, w1_ref, w3_ref, w2_ref, rw_ref, res_ref, o_ref, acc_ref):
    e = pl.program_id(1)
    f = pl.program_id(2)

    @pl.when(jnp.logical_and(e == 0, f == 0))
    def _():
        acc_ref[...] = jnp.zeros_like(acc_ref)

    x = x_ref[...]                                                     # [tt, D] bf16
    h1 = jnp.dot(x, w1_ref[...], preferred_element_type=jnp.float32)   # [tt, tf]
    h3 = jnp.dot(x, w3_ref[...], preferred_element_type=jnp.float32)
    # SwiGLU, with the per-token routing weight folded in before w2 (cheaper:
    # tt*tf multiplies instead of tt*D after the matmul).
    hact = h1 * jax.nn.sigmoid(h1) * h3 * rw_ref[...].astype(jnp.float32)
    acc_ref[...] += jnp.dot(hact.astype(jnp.bfloat16), w2_ref[...],
                            preferred_element_type=jnp.float32)        # [tt, D]

    @pl.when(jnp.logical_and(e == pl.num_programs(1) - 1,
                             f == pl.num_programs(2) - 1))
    def _():
        o_ref[...] = (acc_ref[...] + res_ref[...].astype(jnp.float32)).astype(o_ref.dtype)


def moe(x, w1, w3, w2, rw_e, res, out_dtype=jnp.bfloat16):
    T, D = x.shape
    E, _, F = w1.shape
    tt = _pick(T, (256, 128, 64, 32, 16, 8))
    tf = _pick(F, (512, 256, 128))           # capped at 512 for v7x VMEM budget
    return pl.pallas_call(
        _moe_kernel,
        out_shape=jax.ShapeDtypeStruct((T, D), out_dtype),
        grid=(T // tt, E, F // tf),
        in_specs=[
            pl.BlockSpec((tt, D), lambda t, e, f: (t, 0)),
            pl.BlockSpec((None, D, tf), lambda t, e, f: (e, 0, f)),
            pl.BlockSpec((None, D, tf), lambda t, e, f: (e, 0, f)),
            pl.BlockSpec((None, tf, D), lambda t, e, f: (e, f, 0)),
            pl.BlockSpec((None, tt, 1), lambda t, e, f: (e, t, 0)),
            pl.BlockSpec((tt, D), lambda t, e, f: (t, 0)),
        ],
        out_specs=pl.BlockSpec((tt, D), lambda t, e, f: (t, 0)),
        scratch_shapes=[pltpu.VMEM((tt, D), jnp.float32)],
        compiler_params=_params("parallel", "arbitrary", "arbitrary"),
    )(x, w1, w3, w2, rw_e, res)


# --------------------------------------------------------------------------
# Model glue (plain JAX)
# --------------------------------------------------------------------------
class Cfg:
    dim = 256
    n_heads = 4
    n_kv_heads = 2
    head_dim = 128
    n_layers = 2
    n_experts = 8
    ffn_dim = 512
    vocab_size = 512


def init_params(key, cfg):
    def w(k, shape, scale=0.02):
        return (scale * jax.random.normal(k, shape, jnp.float32)).astype(jnp.bfloat16)

    keys = iter(jax.random.split(key, 8 * cfg.n_layers + 1))
    layers = []
    for _ in range(cfg.n_layers):
        wq = w(next(keys), (cfg.dim, cfg.n_heads * cfg.head_dim))
        wk = w(next(keys), (cfg.dim, cfg.n_kv_heads * cfg.head_dim))
        wv = w(next(keys), (cfg.dim, cfg.n_kv_heads * cfg.head_dim))
        layers.append(dict(
            attn_norm=jnp.ones((cfg.dim,), jnp.float32),
            ffn_norm=jnp.ones((cfg.dim,), jnp.float32),
            wqkv=jnp.concatenate([wq, wk, wv], axis=1),   # fused QKV projection
            wo=w(next(keys), (cfg.n_heads * cfg.head_dim, cfg.dim)),
            w_gate=w(next(keys), (cfg.dim, cfg.n_experts)),
            w1=w(next(keys), (cfg.n_experts, cfg.dim, cfg.ffn_dim)),
            w3=w(next(keys), (cfg.n_experts, cfg.dim, cfg.ffn_dim)),
            w2=w(next(keys), (cfg.n_experts, cfg.ffn_dim, cfg.dim)),
        ))
    return dict(layers=layers,
                norm=jnp.ones((cfg.dim,), jnp.float32),
                output=w(next(keys), (cfg.dim, cfg.vocab_size)))


def top2_routing(logits, n_experts):
    # Mixtral: top-2 gate logits, softmax over the two, scatter to dense weights.
    topv, topi = lax.top_k(logits, 2)
    topw = jax.nn.softmax(topv, axis=-1)
    T = logits.shape[0]
    rw = jnp.zeros((T, n_experts), jnp.float32)
    rw = rw.at[jnp.arange(T)[:, None], topi].set(topw)
    return rw


def tt_transformer_forward(params, cfg, x, start_pos, current_pos, attn_mask, rot_mats):
    # attn_mask is assumed causal and generated inside the attention kernel.
    del start_pos, current_pos, attn_mask   # full-sequence forward (see TODOs)
    cos, sin = rot_mats
    B, S, D = x.shape
    T = B * S
    H, KVH, hd = cfg.n_heads, cfg.n_kv_heads, cfg.head_dim
    G = H // KVH
    half = hd // 2

    # RoPE tables prepared ONCE per forward (not per layer): fold the
    # rotate-half sign into sin, cast to bf16, and tile cos/sin to the folded
    # G*S query axis.
    sign = jnp.concatenate([-jnp.ones((half,), jnp.float32),
                            jnp.ones((half,), jnp.float32)])
    cos_k = cos.astype(jnp.bfloat16)                         # [S, hd]
    sin_k = (sin * sign[None, :]).astype(jnp.bfloat16)       # [S, hd]
    cos_q = jnp.tile(cos_k, (G, 1))                          # [G*S, hd]
    sin_q = jnp.tile(sin_k, (G, 1))

    h = x.reshape(T, D).astype(jnp.bfloat16)
    for lp in params["layers"]:
        # ---- attention block (norm fused into the fused QKV projection) ----
        qkv = rmsnorm_matmul(h, lp["attn_norm"], lp["wqkv"])  # [T, (H+2KVH)*hd]
        q = (qkv[:, : H * hd].reshape(B, S, H, hd)
             .transpose(0, 2, 1, 3).reshape(B, KVH, G * S, hd))
        k = qkv[:, H * hd:(H + KVH) * hd].reshape(B, S, KVH, hd).transpose(0, 2, 1, 3)
        v = qkv[:, (H + KVH) * hd:].reshape(B, S, KVH, hd).transpose(0, 2, 1, 3)
        a = attention(q, k, v, cos_q, sin_q, cos_k, sin_k, S)  # [B, KVH, G*S, hd]
        a = a.reshape(B, H, S, hd).transpose(0, 2, 1, 3).reshape(T, H * hd)
        h = matmul_residual(a, lp["wo"], h)                   # fused residual add

        # ---- MoE block (norm + gate projection fused in one kernel) ----
        hn, gate_logits = rmsnorm_gate(h, lp["ffn_norm"], lp["w_gate"])
        rw = top2_routing(gate_logits, cfg.n_experts)          # [T, E]
        rw_e = jnp.transpose(rw).reshape(cfg.n_experts, T, 1)
        h = moe(hn, lp["w1"], lp["w3"], lp["w2"], rw_e, h)     # fused residual add

    # final norm fused into the output projection
    logits = rmsnorm_matmul(h, params["norm"], params["output"],
                            out_dtype=jnp.float32)             # [T, vocab]
    return logits.reshape(B, S, cfg.vocab_size)


# --------------------------------------------------------------------------
if __name__ == "__main__":
    cfg = Cfg()
    key = jax.random.PRNGKey(0)
    kp, kx = jax.random.split(key)
    params = init_params(kp, cfg)

    B, S = 2, 16
    x = jax.random.normal(kx, (B, S, cfg.dim), jnp.float32)
    start_pos, current_pos = 0, S

    # additive causal mask [S, S] (kept for interface parity; the kernel
    # generates the causal mask itself)
    idx = jnp.arange(S)
    attn_mask = jnp.where(idx[None, :] <= idx[:, None], 0.0, -1e9).astype(jnp.float32)

    # RoPE cos/sin (rotate-half convention), positions offset by start_pos
    pos = start_pos + jnp.arange(S, dtype=jnp.float32)
    inv_freq = 1.0 / (10000.0 ** (jnp.arange(0, cfg.head_dim, 2, dtype=jnp.float32)
                                  / cfg.head_dim))
    ang = pos[:, None] * inv_freq[None, :]                    # [S, hd/2]
    cos = jnp.concatenate([jnp.cos(ang), jnp.cos(ang)], axis=-1)
    sin = jnp.concatenate([jnp.sin(ang), jnp.sin(ang)], axis=-1)

    out = tt_transformer_forward(params, cfg, x, start_pos, current_pos,
                                 attn_mask, (cos, sin))
    out = jax.block_until_ready(out)
    assert out.shape == (B, S, cfg.vocab_size) and out.dtype == jnp.float32
    assert bool(jnp.all(jnp.isfinite(out)))
    print("KERNEL_OK")
</pallas_src>

<mosaic_0001>
module attributes {stable_mosaic.version = 11 : i64} {
  func.func @_rmsnorm_matmul_kernel(%arg0: i32, %arg1: i32, %arg2: memref<32x256xbf16, #tpu.memory_space<vmem>>, %arg3: memref<1x256xf32, #tpu.memory_space<vmem>>, %arg4: memref<256x512xbf16, #tpu.memory_space<vmem>>, %arg5: memref<32x512xbf16, #tpu.memory_space<vmem>>, %arg6: memref<32x256xbf16, #tpu.memory_space<vmem>>) attributes {dimension_semantics = [#tpu.dimension_semantics<parallel>, #tpu.dimension_semantics<arbitrary>], iteration_bounds = array<i64: 1, 2>, scalar_prefetch = 0 : i64, scratch_operands = 1 : i64, tpu.core_type = #tpu.core_type<tc>, window_params = [{transform_indices = @transform_0, window_bounds = array<i64: 32, 256>}, {pipeline_mode = #tpu.pipeline_mode<synchronous>, transform_indices = @transform_1, window_bounds = array<i64: 1, 256>}, {transform_indices = @transform_2, window_bounds = array<i64: 256, 512>}, {transform_indices = @transform_3, window_bounds = array<i64: 32, 512>}]} {
    %c0_i32 = arith.constant 0 : i32
    %0 = arith.cmpi eq, %arg1, %c0_i32 : i32
    %1 = arith.extui %0 : i1 to i32
    %c0_i32_0 = arith.constant 0 : i32
    %2 = arith.cmpi ne, %1, %c0_i32_0 : i32
    scf.if %2 {
      %c0_6 = arith.constant 0 : index
      %c0_7 = arith.constant 0 : index
      %8 = vector.load %arg2[%c0_6, %c0_7] : memref<32x256xbf16, #tpu.memory_space<vmem>>, vector<32x256xbf16>
      %9 = arith.extf %8 : vector<32x256xbf16> to vector<32x256xf32>
      %10 = arith.mulf %9, %9 : vector<32x256xf32>
      %cst_8 = arith.constant dense<0.000000e+00> : vector<32xf32>
      %11 = vector.multi_reduction <add>, %10, %cst_8 [1] : vector<32x256xf32> to vector<32xf32>
      %12 = vector.shape_cast %11 : vector<32xf32> to vector<32x1xf32>
      %cst_9 = arith.constant 2.560000e+02 : f32
      %13 = vector.broadcast %cst_9 : f32 to vector<32x1xf32>
      %14 = arith.divf %12, %13 : vector<32x1xf32>
      %cst_10 = arith.constant 9.99999974E-6 : f32
      %15 = vector.broadcast %cst_10 : f32 to vector<32x1xf32>
      %16 = arith.addf %14, %15 : vector<32x1xf32>
      %17 = math.rsqrt %16 : vector<32x1xf32>
      %18 = vector.broadcast %17 : vector<32x1xf32> to vector<32x256xf32>
      %19 = arith.mulf %9, %18 : vector<32x256xf32>
      %c0_11 = arith.constant 0 : index
      %c0_12 = arith.constant 0 : index
      %20 = vector.load %arg3[%c0_11, %c0_12] : memref<1x256xf32, #tpu.memory_space<vmem>>, vector<1x256xf32>
      %21 = vector.broadcast %20 : vector<1x256xf32> to vector<32x256xf32>
      %22 = arith.mulf %19, %21 : vector<32x256xf32>
      %23 = arith.truncf %22 : vector<32x256xf32> to vector<32x256xbf16>
      %c0_13 = arith.constant 0 : index
      %c0_14 = arith.constant 0 : index
      %24 = vector.load %arg6[%c0_13, %c0_14] : memref<32x256xbf16, #tpu.memory_space<vmem>>, vector<32x256xbf16>
      tpu.vector_store %arg6[%c0_13, %c0_14], %23 {strides = array<i32>} : memref<32x256xbf16, #tpu.memory_space<vmem>>, vector<32x256xbf16>,
    } else {
    }
    %c0 = arith.constant 0 : index
    %c0_1 = arith.constant 0 : index
    %3 = vector.load %arg6[%c0, %c0_1] : memref<32x256xbf16, #tpu.memory_space<vmem>>, vector<32x256xbf16>
    %c0_2 = arith.constant 0 : index
    %c0_3 = arith.constant 0 : index
    %4 = vector.load %arg4[%c0_2, %c0_3] : memref<256x512xbf16, #tpu.memory_space<vmem>>, vector<256x512xbf16>
    %cst = arith.constant dense<0.000000e+00> : vector<32x512xf32>
    %5 = tpu.matmul %3, %4, %cst {dimension_numbers = #tpu.dot_dimension_numbers<[1], [0], [0], [1], [0, 0, 1, 1], [], []>} : vector<32x256xbf16>, vector<256x512xbf16>, vector<32x512xf32> -> vector<32x512xf32>
    %6 = arith.truncf %5 : vector<32x512xf32> to vector<32x512xbf16>
    %c0_4 = arith.constant 0 : index
    %c0_5 = arith.constant 0 : index
    %7 = vector.load %arg5[%c0_4, %c0_5] : memref<32x512xbf16, #tpu.memory_space<vmem>>, vector<32x512xbf16>
    tpu.vector_store %arg5[%c0_4, %c0_5], %6 {strides = array<i32>} : memref<32x512xbf16, #tpu.memory_space<vmem>>, vector<32x512xbf16>,
    return
  }
  func.func @transform_0(%arg0: i32, %arg1: i32) -> (i32, i32) {
    %c0_i32 = arith.constant 0 : i32
    %c0_i32_0 = arith.constant 0 : i32
    return %arg0, %c0_i32 : i32, i32
  }
  func.func @transform_1(%arg0: i32, %arg1: i32) -> (i32, i32) {
    %c0_i32 = arith.constant 0 : i32
    %c0_i32_0 = arith.constant 0 : i32
    %c0_i32_1 = arith.constant 0 : i32
    return %c0_i32, %c0_i32_0 : i32, i32
  }
  func.func @transform_2(%arg0: i32, %arg1: i32) -> (i32, i32) {
    %c0_i32 = arith.constant 0 : i32
    %c0_i32_0 = arith.constant 0 : i32
    return %c0_i32, %arg1 : i32, i32
  }
  func.func @transform_3(%arg0: i32, %arg1: i32) -> (i32, i32) {
    %c0_i32 = arith.constant 0 : i32
    return %arg0, %arg1 : i32, i32
  }
}

</mosaic_0001>

<llo_original>
// kernel: tpu_custom_call.1
$region0: #{tpu_custom_call.1}
  #allocation0 [shape = 'u32[]', space=smem, size = 0x4, offset = 0x4, fixed_abs, tag = 'smem constant byte address 0x4 - core index']
  #allocation1 [shape = 'u32[72,128]{1,0:T(1,128)}', space=vmem, size = 0x9000, scoped, tag = 'internal scratch']
  #allocation2 [shape = 'bf16[32,256]{1,0:T(8,128)(2,1)}', space=vmem, size = 0x4000, scoped, tag = 'scratch operand']
  %s0 = inlined_call_operand.hbm [shape: bf16[32,256], index: 0, kind: input, shape index: {}]
  %s1 = inlined_call_operand.hbm [shape: f32[1,256], index: 1, kind: input, shape index: {}]
  %s2 = inlined_call_operand.hbm [shape: bf16[256,1024], index: 2, kind: input, shape index: {}]
  %s3 = inlined_call_operand.hbm [shape: bf16[32,1024], index: 3, kind: output, shape index: {}]
  %s4 = sld [smem:[#allocation0]]
  $region61: #{tpu_custom_call.1} parent=0
    _
  %s6 = ssub.s32 1, %s4
  %s7 = scalar_select 0, %s6, %s4
  $region1: #{tpu_custom_call.1} parent=0
    #allocation3 [shape = 'u8[16384]{0}', space=vmem, size = 0x4000, scoped, tag = 'input window, operand 0, single buffered']
    #allocation4 [shape = 's32[2]{0}', space=sflag, size = 0x8, scoped, tag = 'scoped memory for tpu_custom_call.1']
    #allocation5 [shape = 's32[2]{0}', space=sflag, size = 0x8, scoped, tag = 'scoped memory for tpu_custom_call.1']
    #allocation6 [shape = 'u8[1024]{0}', space=vmem, size = 0x400, scoped, tag = 'input window, operand 1, single buffered']
    #allocation7 [shape = 's32[1]{0}', space=sflag, size = 0x4, scoped, tag = 'scoped memory for tpu_custom_call.1']
    #allocation8 [shape = 'u8[524288]{0}', space=vmem, size = 0x80000, scoped, tag = 'input window, operand 2']
    #allocation9 [shape = 'u8[65536]{0}', space=vmem, size = 0x10000, scoped, tag = 'output window, operand 0']
    %8 = vsyncpa [#allocation4], 0
    %9 = vsyncpa [#allocation7], 0
    %10 = vsyncpa [#allocation5], 0
    %s11 = scalar_lea.sflag [#allocation5], 1
    %12 = vsyncpa %s11, 0
    loop: start=0, step=1, limit=4
    $region2: #{tpu_custom_call.1} parent=1 // loop_pre_header
      _
    $region3: #{tpu_custom_call.1} parent=1 // loop_header
      %s14 = sphi 0, %s18
      %p15 = scmp.ge.s32.totalorder %s14, 4
      %s21 = sphi 0, %s33
      %s22 = sphi 0, %s29
      %s23 = sphi 0, %s21
      %s24 = sphi 0, %s22
      %s25 = sphi 0, %s23
      %s26 = sphi 0, %s24
      %s36 = sphi 0, %s38
      %s39 = sphi 0, %s36
      %s40 = sphi 0, %s39
      %s56 = sphi 0, %s40
      %s60 = sphi 0, %s60
      %s62 = sphi 0, %s60
      %s63 = sphi 0, %s62
      %s77 = sphi 0, %s63
      %s83 = sphi 0, %s85
      %s86 = sphi 0, %s83
      %s87 = sphi 0, %s86
      %s103 = sphi 0, %s87
      %s111 = sphi 0, %s113
      %s114 = sphi 0, %s111
      %s115 = sphi 0, %s114
      %s131 = sphi 0, %s115
    $region4: #{tpu_custom_call.1} parent=1 // loop_header_branch
      %17 = sbr.rel (%p15) target = $region8
    $region5: #{tpu_custom_call.1} parent=1 // loop_body
      %s19 = ssub.s32 %s14, 1
      %s20 = ssub.s32 %s14, 2
      %s27 = sadd.s32 1, %s22
      %p28 = scmp.ge.s32.totalorder %s27, 2
      %s29 = scalar_select %p28, 0, %s27
      %s30 = sadd.s32 1, %s21
      %s31 = scalar_select %p28, %s30, %s21
      %p32 = scmp.ge.s32.totalorder %s31, 1
      %s33 = scalar_select %p32, 0, %s31
      %s34 = ssub.s32 %s21, %s33
      %p35 = scmp.eq.s32.totalorder %s34, 0
      %s37 = sadd.s32 %s36, 1
      %s38 = scalar_select %p35, %s36, %s37
      %p41 = pneg %p35
      %p42 = scmp.eq.s32.totalorder %s14, 1
      %p43 = por %p41, %p42
      %p44 = scmp.ne.s32.totalorder %s36, %s39
      %p45 = scmp.eq.s32.totalorder %s14, 0
      %p46 = por %p44, %p45
      %p47 = scmp.ne.s32.totalorder %s36, %s39
      %p48 = scmp.eq.s32.totalorder %s19, 1
      %p49 = por %p47, %p48
      %p50 = scmp.ne.s32.totalorder %s39, %s40
      %p51 = scmp.eq.s32.totalorder %s19, 0
      %p52 = por %p50, %p51
      %p53 = scmp.ne.s32.totalorder %s39, %s40
      %p54 = scmp.eq.s32.totalorder %s20, 1
      %p55 = por %p53, %p54
      %p57 = scmp.ne.s32.totalorder %s40, %s56
      %p58 = scmp.eq.s32.totalorder %s20, 0
      %p59 = por %p57, %p58
      %s61 = sadd.s32 %s60, 1
      %p64 = scmp.eq.s32.totalorder %s14, 1
      %p65 = scmp.ne.s32.totalorder %s60, %s62
      %p66 = scmp.eq.s32.totalorder %s14, 0
      %p67 = por %p65, %p66
      %p68 = scmp.ne.s32.totalorder %s60, %s62
      %p69 = scmp.eq.s32.totalorder %s19, 1
      %p70 = por %p68, %p69
      %p71 = scmp.ne.s32.totalorder %s62, %s63
      %p72 = scmp.eq.s32.totalorder %s19, 0
      %p73 = por %p71, %p72
      %p74 = scmp.ne.s32.totalorder %s62, %s63
      %p75 = scmp.eq.s32.totalorder %s20, 1
      %p76 = por %p74, %p75
      %p78 = scmp.ne.s32.totalorder %s63, %s77
      %p79 = scmp.eq.s32.totalorder %s20, 0
      %p80 = por %p78, %p79
      %s81 = ssub.s32 %s22, %s29
      %p82 = scmp.eq.s32.totalorder %s81, 0
      %s84 = sadd.s32 %s83, 1
      %s85 = scalar_select %p82, %s83, %s84
      %p88 = pneg %p82
      %p89 = scmp.eq.s32.totalorder %s14, 1
      %p90 = por %p88, %p89
      %p91 = scmp.ne.s32.totalorder %s83, %s86
      %p92 = scmp.eq.s32.totalorder %s14, 0
      %p93 = por %p91, %p92
      %p94 = scmp.ne.s32.totalorder %s83, %s86
      %p95 = scmp.eq.s32.totalorder %s19, 1
      %p96 = por %p94, %p95
      %p97 = scmp.ne.s32.totalorder %s86, %s87
      %p98 = scmp.eq.s32.totalorder %s19, 0
      %p99 = por %p97, %p98
      %p100 = scmp.ne.s32.totalorder %s86, %s87
      %p101 = scmp.eq.s32.totalorder %s20, 1
      %p102 = por %p100, %p101
      %p104 = scmp.ne.s32.totalorder %s87, %s103
      %p105 = scmp.eq.s32.totalorder %s20, 0
      %p106 = por %p104, %p105
      %s107 = ssub.s32 %s21, %s33
      %s108 = ssub.s32 %s22, %s29
      %s109 = sor.u32 %s107, %s108
      %p110 = scmp.eq.s32.totalorder %s109, 0
      %s112 = sadd.s32 %s111, 1
      %s113 = scalar_select %p110, %s111, %s112
      %p116 = pneg %p110
      %p117 = scmp.eq.s32.totalorder %s14, 1
      %p118 = por %p116, %p117
      %p119 = scmp.ne.s32.totalorder %s111, %s114
      %p120 = scmp.eq.s32.totalorder %s14, 0
      %p121 = por %p119, %p120
      %p122 = scmp.ne.s32.totalorder %s111, %s114
      %p123 = scmp.eq.s32.totalorder %s19, 1
      %p124 = por %p122, %p123
      %p125 = scmp.ne.s32.totalorder %s114, %s115
      %p126 = scmp.eq.s32.totalorder %s19, 0
      %p127 = por %p125, %p126
      %p128 = scmp.ne.s32.totalorder %s114, %s115
      %p129 = scmp.eq.s32.totalorder %s20, 1
      %p130 = por %p128, %p129
      %p132 = scmp.ne.s32.totalorder %s115, %s131
      %p133 = scmp.eq.s32.totalorder %s20, 0
      %p134 = por %p132, %p133
      %p135 = scmp.le.s32.totalorder 1, %s14
      %p136 = scmp.lt.s32.totalorder %s14, 3
      %p137 = pnand %p135, %p136
      %p138 = pneg %p137
      // Predicated region
      $region9: #{tpu_custom_call.1} parent=5 // pred_check
        _
      $region10: #{tpu_custom_call.1} parent=5 // pred_check_branch
        %140 = sbr.rel (%p137) target = $region12
      $region11: #{tpu_custom_call.1} parent=5 // pred_region
        %s141 = ssub.s32 %s14, 1
        // Predicated region
        $region13: #{tpu_custom_call.1} parent=11 // pred_check
          %p142 = pneg %p52
        $region14: #{tpu_custom_call.1} parent=11 // pred_check_branch
          %144 = sbr.rel (%p142) target = $region16
        $region15: #{tpu_custom_call.1} parent=11 // pred_region
          %s145 = smul.u32 4, %s23
          %147 = vsyncadd [#allocation4], 0
          %s148 = smul.addr %s145, 2
          %s149 = smul.addr %s148, 4
          %s150 = scalar_lea.hbm %s0, %s149
          %s151 = sshll.u32 %s150, 4
          %s152 = int_to_ptr.hbm [resolvable:$true] %s151
          %s153 = sshll.u32 [#allocation3], 4
          %s154 = int_to_ptr.vmem [resolvable:$true] %s153
          %159 = dma.hbm_to_vmem [thread:$0]  %s152, 512, %s154, [#allocation4], 128, 128, 8
        $region16: #{tpu_custom_call.1} parent=11 // pred_fallthru
          _
        // Predicated region
        $region17: #{tpu_custom_call.1} parent=11 // pred_check
          %p160 = pneg %p73
        $region18: #{tpu_custom_call.1} parent=11 // pred_check_branch
          %162 = sbr.rel (%p160) target = $region20
        $region19: #{tpu_custom_call.1} parent=11 // pred_region
          %164 = vsyncadd [#allocation7], 0
          %s166 = sshll.u32 %s1, 4
          %s167 = int_to_ptr.hbm [resolvable:$true] %s166
          %s168 = sshll.u32 [#allocation6], 4
          %s169 = int_to_ptr.vmem [resolvable:$true] %s168
          %171 = dma.hbm_to_vmem [thread:$0]  %s167, 32, %s169, [#allocation7]
        $region20: #{tpu_custom_call.1} parent=11 // pred_fallthru
          _
      $region12: #{tpu_custom_call.1} parent=5 // pred_fallthru
        _
      %p172 = scmp.lt.s32.totalorder %s14, 2
      // Predicated region
      $region21: #{tpu_custom_call.1} parent=5 // pred_check
        %p173 = pneg %p172
      $region22: #{tpu_custom_call.1} parent=5 // pred_check_branch
        %175 = sbr.rel (%p173) target = $region24
      $region23: #{tpu_custom_call.1} parent=5 // pred_region
        // Predicated region
        $region25: #{tpu_custom_call.1} parent=23 // pred_check
          %p176 = pneg %p93
        $region26: #{tpu_custom_call.1} parent=23 // pred_check_branch
          %178 = sbr.rel (%p176) target = $region28
        $region27: #{tpu_custom_call.1} parent=23 // pred_region
          %s179 = sand.u32 %s14, 1
          %s180 = scalar_lea.sflag [#allocation4], %s179
          %s181 = sand.u32 %s83, 1
          %s182 = smul.addr %s181, 512
          %s183 = scalar_lea.vmem [#allocation8], %s182
          %s184 = smul.u32 4, %s22
          %186 = vsyncadd %s180, 0
          %s187 = smul.addr %s184, 4
          %s188 = scalar_lea.hbm %s2, %s187
          %s189 = sshll.u32 %s188, 4
          %s190 = int_to_ptr.hbm [resolvable:$true] %s189
          %s191 = sshll.u32 %s183, 4
          %s192 = int_to_ptr.vmem [resolvable:$true] %s191
          %197 = dma.hbm_to_vmem [thread:$0]  %s190, 8192, %s192, %s180, 512, 256, 16
        $region28: #{tpu_custom_call.1} parent=23 // pred_fallthru
          _
      $region24: #{tpu_custom_call.1} parent=5 // pred_fallthru
        _
      %p198 = scmp.le.s32.totalorder 1, %s14
      %p199 = scmp.lt.s32.totalorder %s14, 3
      %p200 = pnand %p198, %p199
      %p201 = pneg %p200
      // Predicated region
      $region29: #{tpu_custom_call.1} parent=5 // pred_check
        _
      $region30: #{tpu_custom_call.1} parent=5 // pred_check_branch
        %203 = sbr.rel (%p200) target = $region32
      $region31: #{tpu_custom_call.1} parent=5 // pred_region
        %s204 = ssub.s32 %s14, 1
        // Predicated region
        $region33: #{tpu_custom_call.1} parent=31 // pred_check
          %p205 = pneg %p52
        $region34: #{tpu_custom_call.1} parent=31 // pred_check_branch
          %207 = sbr.rel (%p205) target = $region36
        $region35: #{tpu_custom_call.1} parent=31 // pred_region
          %209 = dma.done [#allocation4], 512
        $region36: #{tpu_custom_call.1} parent=31 // pred_fallthru
          _
        // Predicated region
        $region37: #{tpu_custom_call.1} parent=31 // pred_check
          %p210 = pneg %p73
        $region38: #{tpu_custom_call.1} parent=31 // pred_check_branch
          %212 = sbr.rel (%p210) target = $region40
        $region39: #{tpu_custom_call.1} parent=31 // pred_region
          %214 = dma.done [#allocation7], 32
        $region40: #{tpu_custom_call.1} parent=31 // pred_fallthru
          _
        %s215 = sand.u32 %s19, 1
        %s216 = scalar_lea.sflag [#allocation4], %s215
        %s217 = sand.u32 %s86, 1
        %s218 = smul.addr %s217, 512
        %s219 = scalar_lea.vmem [#allocation8], %s218
        // Predicated region
        $region41: #{tpu_custom_call.1} parent=31 // pred_check
          %p220 = pneg %p99
        $region42: #{tpu_custom_call.1} parent=31 // pred_check_branch
          %222 = sbr.rel (%p220) target = $region44
        $region43: #{tpu_custom_call.1} parent=31 // pred_region
          %224 = dma.done %s216, 8192
        $region44: #{tpu_custom_call.1} parent=31 // pred_fallthru
          _
        %p225 = pneg %p52
        %p226 = pneg %p49
        %p227 = pneg %p73
        %p228 = pneg %p70
        %s229 = sand.u32 %s19, 1
        %s230 = scalar_lea.sflag [#allocation4], %s229
        %s231 = sand.u32 %s86, 1
        %s232 = smul.addr %s231, 512
        %s233 = scalar_lea.vmem [#allocation8], %s232
        %p234 = pneg %p99
        %p235 = pneg %p96
        %p236 = pneg %p127
        %p237 = pneg %p124
        %s238 = sand.u32 %s114, 1
        %s239 = scalar_lea.sflag [#allocation5], %s238
        %s240 = sand.u32 %s114, 1
        %s241 = smul.addr %s240, 64
        %s242 = scalar_lea.vmem [#allocation9], %s241
        %s243 = smul.u32 4, %s23
        %s244 = smul.u32 4, %s24
        %s245 = smul.u32 4, %s23
        %s246 = smul.u32 4, %s24
        %p247 = scmp.eq.s32.totalorder %s24, 0
        // Predicated region
        $region45: #{tpu_custom_call.1} parent=31 // pred_check
          %p248 = pneg %p247
        $region46: #{tpu_custom_call.1} parent=31 // pred_check_branch
          %250 = sbr.rel (%p248) target = $region48
        $region47: #{tpu_custom_call.1} parent=31 // pred_region
          %v251 = vld [vmem:[#allocation3] sm:$0xff]
          %v252 = vld [vmem:[#allocation3 + $0x8] sm:$0xff]
          %v253 = vld [vmem:[#allocation3 + $0x10] sm:$0xff]
          %v254 = vld [vmem:[#allocation3 + $0x18] sm:$0xff]
          %v255 = vunpack.c.l.bf16 %v251
          %v256 = vunpack.c.h.bf16 %v251
          %v257 = vunpack.c.l.bf16 %v252
          %v258 = vunpack.c.h.bf16 %v252
          %v259 = vunpack.c.l.bf16 %v253
          %v260 = vunpack.c.h.bf16 %v253
          %v261 = vunpack.c.l.bf16 %v254
          %v262 = vunpack.c.h.bf16 %v254
          %v263 = vmul.f32 %v255, %v255
          %v264 = vmul.f32 %v256, %v256
          %v265 = vmul.f32 %v257, %v257
          %v266 = vmul.f32 %v258, %v258
          %v267 = vmul.f32 %v259, %v259
          %v268 = vmul.f32 %v260, %v260
          %v269 = vmul.f32 %v261, %v261
          %v270 = vmul.f32 %v262, %v262
          %v271 = vadd.f32 %v263, %v264
          %272 = vadd.xlane.f32.xlu0 %v271
          %v273 = vpop.xlane.xlu0 %272
          %v274 = vadd.f32 %v265, %v266
          %275 = vadd.xlane.f32.xlu0 %v274
          %v276 = vpop.xlane.xlu0 %275
          %v277 = vadd.f32 %v267, %v268
          %278 = vadd.xlane.f32.xlu0 %v277
          %v279 = vpop.xlane.xlu0 %278
          %v280 = vadd.f32 %v269, %v270
          %281 = vadd.xlane.f32.xlu0 %v280
          %v282 = vpop.xlane.xlu0 %281
          %v283 = vrcp.pop 256.0
          %v284 = vmul.f32 256.0, %v283
          %v285 = vsub.f32 1.0, %v284
          %v286 = vmul.f32 %v283, %v285
          %v287 = vadd.f32 %v283, %v286
          %vm288 = vweird.f32 %v283
          %v289 = vsel %vm288, %v283, %v287
          %v290 = vmul.f32 %v273, %v289
          %v291 = vmul.f32 %v276, %v289
          %v292 = vmul.f32 %v279, %v289
          %v293 = vmul.f32 %v282, %v289
          %v294 = vadd.f32 %v290, 1e-05
          %v295 = vadd.f32 %v291, 1e-05
          %v296 = vadd.f32 %v292, 1e-05
          %v297 = vadd.f32 %v293, 1e-05
          %v298 = vrsqrt.pop %v294
          %v299 = vmul.f32 %v298, %v294
          %v300 = vmul.f32 %v299, %v298
          %v301 = vmul.f32 0.5, %v300
          %v302 = vsub.f32 1.5, %v301
          %v303 = vmul.f32 %v298, %v302
          %vm304 = vweird.f32 %v294
          %vm305 = vweird.f32 %v298
          %vm306 = vmor %vm304, %vm305
          %v307 = vsel %vm306, %v298, %v303
          %v308 = vrsqrt.pop %v295
          %v309 = vmul.f32 %v308, %v295
          %v310 = vmul.f32 %v309, %v308
          %v311 = vmul.f32 0.5, %v310
          %v312 = vsub.f32 1.5, %v311
          %v313 = vmul.f32 %v308, %v312
          %vm314 = vweird.f32 %v295
          %vm315 = vweird.f32 %v308
          %vm316 = vmor %vm314, %vm315
          %v317 = vsel %vm316, %v308, %v313
          %v318 = vrsqrt.pop %v296
          %v319 = vmul.f32 %v318, %v296
          %v320 = vmul.f32 %v319, %v318
          %v321 = vmul.f32 0.5, %v320
          %v322 = vsub.f32 1.5, %v321
          %v323 = vmul.f32 %v318, %v322
          %vm324 = vweird.f32 %v296
          %vm325 = vweird.f32 %v318
          %vm326 = vmor %vm324, %vm325
          %v327 = vsel %vm326, %v318, %v323
          %v328 = vrsqrt.pop %v297
          %v329 = vmul.f32 %v328, %v297
          %v330 = vmul.f32 %v329, %v328
          %v331 = vmul.f32 0.5, %v330
          %v332 = vsub.f32 1.5, %v331
          %v333 = vmul.f32 %v328, %v332
          %vm334 = vweird.f32 %v297
          %vm335 = vweird.f32 %v328
          %vm336 = vmor %vm334, %vm335
          %v337 = vsel %vm336, %v328, %v333
          %v338 = vmul.f32 %v255, %v307
          %v339 = vmul.f32 %v256, %v307
          %v340 = vmul.f32 %v257, %v317
          %v341 = vmul.f32 %v258, %v317
          %v342 = vmul.f32 %v259, %v327
          %v343 = vmul.f32 %v260, %v327
          %v344 = vmul.f32 %v261, %v337
          %v345 = vmul.f32 %v262, %v337
          %v346 = vld [vmem:[#allocation6] sm:$0x3]
          %v348 = vperm.slane %v346, 0
          %v349 = vperm.slane %v346, 1
          %v352 = vmul.f32 %v338, %v348
          %v353 = vmul.f32 %v339, %v349
          %v354 = vmul.f32 %v340, %v348
          %v355 = vmul.f32 %v341, %v349
          %v356 = vmul.f32 %v342, %v348
          %v357 = vmul.f32 %v343, %v349
          %v358 = vmul.f32 %v344, %v348
          %v359 = vmul.f32 %v345, %v349
          %v360 = vpack.c.bf16 %v353, %v352
          %v361 = vpack.c.bf16 %v355, %v354
          %v362 = vpack.c.bf16 %v357, %v356
          %v363 = vpack.c.bf16 %v359, %v358
          %364 = vst [vmem:[#allocation2] sm:$0xff] %v360
          %365 = vst [vmem:[#allocation2 + $0x8] sm:$0xff] %v361
          %366 = vst [vmem:[#allocation2 + $0x10] sm:$0xff] %v362
          %367 = vst [vmem:[#allocation2 + $0x18] sm:$0xff] %v363
        $region48: #{tpu_custom_call.1} parent=31 // pred_fallthru
          _
        %v368 = vld [vmem:[#allocation2] sm:$0xff]
        %v369 = vld [vmem:[#allocation2 + $0x8] sm:$0xff]
        %v370 = vld [vmem:[#allocation2 + $0x10] sm:$0xff]
        %v371 = vld [vmem:[#allocation2 + $0x18] sm:$0xff]
        %v372 = vld [vmem:[%s219] sm:$0xff]
        %v373 = vld [vmem:[%s219 + $0x8] sm:$0xff]
        %v374 = vld [vmem:[%s219 + $0x10] sm:$0xff]
        %v375 = vld [vmem:[%s219 + $0x18] sm:$0xff]
        %v376 = vld [vmem:[%s219 + $0x20] sm:$0xff]
        %v377 = vld [vmem:[%s219 + $0x28] sm:$0xff]
        %v378 = vld [vmem:[%s219 + $0x30] sm:$0xff]
        %v379 = vld [vmem:[%s219 + $0x38] sm:$0xff]
        %v380 = vld [vmem:[%s219 + $0x40] sm:$0xff]
        %v381 = vld [vmem:[%s219 + $0x48] sm:$0xff]
        %v382 = vld [vmem:[%s219 + $0x50] sm:$0xff]
        %v383 = vld [vmem:[%s219 + $0x58] sm:$0xff]
        %v384 = vld [vmem:[%s219 + $0x60] sm:$0xff]
        %v385 = vld [vmem:[%s219 + $0x68] sm:$0xff]
        %v386 = vld [vmem:[%s219 + $0x70] sm:$0xff]
        %v387 = vld [vmem:[%s219 + $0x78] sm:$0xff]
        %v388 = vld [vmem:[%s219 + $0x80] sm:$0xff]
        %v389 = vld [vmem:[%s219 + $0x88] sm:$0xff]
        %v390 = vld [vmem:[%s219 + $0x90] sm:$0xff]
        %v391 = vld [vmem:[%s219 + $0x98] sm:$0xff]
        %v392 = vld [vmem:[%s219 + $0xa0] sm:$0xff]
        %v393 = vld [vmem:[%s219 + $0xa8] sm:$0xff]
        %v394 = vld [vmem:[%s219 + $0xb0] sm:$0xff]
        %v395 = vld [vmem:[%s219 + $0xb8] sm:$0xff]
        %v396 = vld [vmem:[%s219 + $0xc0] sm:$0xff]
        %v397 = vld [vmem:[%s219 + $0xc8] sm:$0xff]
        %v398 = vld [vmem:[%s219 + $0xd0] sm:$0xff]
        %v399 = vld [vmem:[%s219 + $0xd8] sm:$0xff]
        %v400 = vld [vmem:[%s219 + $0xe0] sm:$0xff]
        %v401 = vld [vmem:[%s219 + $0xe8] sm:$0xff]
        %v402 = vld [vmem:[%s219 + $0xf0] sm:$0xff]
        %v403 = vld [vmem:[%s219 + $0xf8] sm:$0xff]
        %v404 = vld [vmem:[%s219 + $0x100] sm:$0xff]
        %v405 = vld [vmem:[%s219 + $0x108] sm:$0xff]
        %v406 = vld [vmem:[%s219 + $0x110] sm:$0xff]
        %v407 = vld [vmem:[%s219 + $0x118] sm:$0xff]
        %v408 = vld [vmem:[%s219 + $0x120] sm:$0xff]
        %v409 = vld [vmem:[%s219 + $0x128] sm:$0xff]
        %v410 = vld [vmem:[%s219 + $0x130] sm:$0xff]
        %v411 = vld [vmem:[%s219 + $0x138] sm:$0xff]
        %v412 = vld [vmem:[%s219 + $0x140] sm:$0xff]
        %v413 = vld [vmem:[%s219 + $0x148] sm:$0xff]
        %v414 = vld [vmem:[%s219 + $0x150] sm:$0xff]
        %v415 = vld [vmem:[%s219 + $0x158] sm:$0xff]
        %v416 = vld [vmem:[%s219 + $0x160] sm:$0xff]
        %v417 = vld [vmem:[%s219 + $0x168] sm:$0xff]
        %v418 = vld [vmem:[%s219 + $0x170] sm:$0xff]
        %v419 = vld [vmem:[%s219 + $0x178] sm:$0xff]
        %v420 = vld [vmem:[%s219 + $0x180] sm:$0xff]
        %v421 = vld [vmem:[%s219 + $0x188] sm:$0xff]
        %v422 = vld [vmem:[%s219 + $0x190] sm:$0xff]
        %v423 = vld [vmem:[%s219 + $0x198] sm:$0xff]
        %v424 = vld [vmem:[%s219 + $0x1a0] sm:$0xff]
        %v425 = vld [vmem:[%s219 + $0x1a8] sm:$0xff]
        %v426 = vld [vmem:[%s219 + $0x1b0] sm:$0xff]
        %v427 = vld [vmem:[%s219 + $0x1b8] sm:$0xff]
        %v428 = vld [vmem:[%s219 + $0x1c0] sm:$0xff]
        %v429 = vld [vmem:[%s219 + $0x1c8] sm:$0xff]
        %v430 = vld [vmem:[%s219 + $0x1d0] sm:$0xff]
        %v431 = vld [vmem:[%s219 + $0x1d8] sm:$0xff]
        %v432 = vld [vmem:[%s219 + $0x1e0] sm:$0xff]
        %v433 = vld [vmem:[%s219 + $0x1e8] sm:$0xff]
        %v434 = vld [vmem:[%s219 + $0x1f0] sm:$0xff]
        %v435 = vld [vmem:[%s219 + $0x1f8] sm:$0xff]
        %v440 = vunpack.c.l.b16 %v368
        %v441 = vunpack.c.h.b16 %v368
        %v442 = vunpack.c.l.b16 %v369
        %v443 = vunpack.c.h.b16 %v369
        %v444 = vunpack.c.l.b16 %v370
        %v445 = vunpack.c.h.b16 %v370
        %v446 = vunpack.c.l.b16 %v371
        %v447 = vunpack.c.h.b16 %v371
        %v448 = vpack.c.b16 %v442, %v440
        %v449 = vpack.c.b16 %v443, %v441
        %v450 = vpack.c.b16 %v446, %v444
        %v451 = vpack.c.b16 %v447, %v445
        %v520 = vunpack.c.l.b16 %v372
        %v521 = vunpack.c.h.b16 %v372
        %v522 = vunpack.c.l.b16 %v373
        %v523 = vunpack.c.h.b16 %v373
        %v524 = vunpack.c.l.b16 %v374
        %v525 = vunpack.c.h.b16 %v374
        %v526 = vunpack.c.l.b16 %v375
        %v527 = vunpack.c.h.b16 %v375
        %v528 = vunpack.c.l.b16 %v376
        %v529 = vunpack.c.h.b16 %v376
        %v530 = vunpack.c.l.b16 %v377
        %v531 = vunpack.c.h.b16 %v377
        %v532 = vunpack.c.l.b16 %v378
        %v533 = vunpack.c.h.b16 %v378
        %v534 = vunpack.c.l.b16 %v379
        %v535 = vunpack.c.h.b16 %v379
        %v536 = vunpack.c.l.b16 %v380
        %v537 = vunpack.c.h.b16 %v380
        %v538 = vunpack.c.l.b16 %v381
        %v539 = vunpack.c.h.b16 %v381
        %v540 = vunpack.c.l.b16 %v382
        %v541 = vunpack.c.h.b16 %v382
        %v542 = vunpack.c.l.b16 %v383
        %v543 = vunpack.c.h.b16 %v383
        %v544 = vunpack.c.l.b16 %v384
        %v545 = vunpack.c.h.b16 %v384
        %v546 = vunpack.c.l.b16 %v385
        %v547 = vunpack.c.h.b16 %v385
        %v548 = vunpack.c.l.b16 %v386
        %v549 = vunpack.c.h.b16 %v386
        %v550 = vunpack.c.l.b16 %v387
        %v551 = vunpack.c.h.b16 %v387
        %v552 = vunpack.c.l.b16 %v388
        %v553 = vunpack.c.h.b16 %v388
        %v554 = vunpack.c.l.b16 %v389
        %v555 = vunpack.c.h.b16 %v389
        %v556 = vunpack.c.l.b16 %v390
        %v557 = vunpack.c.h.b16 %v390
        %v558 = vunpack.c.l.b16 %v391
        %v559 = vunpack.c.h.b16 %v391
        %v560 = vunpack.c.l.b16 %v392
        %v561 = vunpack.c.h.b16 %v392
        %v562 = vunpack.c.l.b16 %v393
        %v563 = vunpack.c.h.b16 %v393
        %v564 = vunpack.c.l.b16 %v394
        %v565 = vunpack.c.h.b16 %v394
        %v566 = vunpack.c.l.b16 %v395
        %v567 = vunpack.c.h.b16 %v395
        %v568 = vunpack.c.l.b16 %v396
        %v569 = vunpack.c.h.b16 %v396
        %v570 = vunpack.c.l.b16 %v397
        %v571 = vunpack.c.h.b16 %v397
        %v572 = vunpack.c.l.b16 %v398
        %v573 = vunpack.c.h.b16 %v398
        %v574 = vunpack.c.l.b16 %v399
        %v575 = vunpack.c.h.b16 %v399
        %v576 = vunpack.c.l.b16 %v400
        %v577 = vunpack.c.h.b16 %v400
        %v578 = vunpack.c.l.b16 %v401
        %v579 = vunpack.c.h.b16 %v401
        %v580 = vunpack.c.l.b16 %v402
        %v581 = vunpack.c.h.b16 %v402
        %v582 = vunpack.c.l.b16 %v403
        %v583 = vunpack.c.h.b16 %v403
        %v584 = vunpack.c.l.b16 %v404
        %v585 = vunpack.c.h.b16 %v404
        %v586 = vunpack.c.l.b16 %v405
        %v587 = vunpack.c.h.b16 %v405
        %v588 = vunpack.c.l.b16 %v406
        %v589 = vunpack.c.h.b16 %v406
        %v590 = vunpack.c.l.b16 %v407
        %v591 = vunpack.c.h.b16 %v407
        %v592 = vunpack.c.l.b16 %v408
        %v593 = vunpack.c.h.b16 %v408
        %v594 = vunpack.c.l.b16 %v409
        %v595 = vunpack.c.h.b16 %v409
        %v596 = vunpack.c.l.b16 %v410
        %v597 = vunpack.c.h.b16 %v410
        %v598 = vunpack.c.l.b16 %v411
        %v599 = vunpack.c.h.b16 %v411
        %v600 = vunpack.c.l.b16 %v412
        %v601 = vunpack.c.h.b16 %v412
        %v602 = vunpack.c.l.b16 %v413
        %v603 = vunpack.c.h.b16 %v413
        %v604 = vunpack.c.l.b16 %v414
        %v605 = vunpack.c.h.b16 %v414
        %v606 = vunpack.c.l.b16 %v415
        %v607 = vunpack.c.h.b16 %v415
        %v608 = vunpack.c.l.b16 %v416
        %v609 = vunpack.c.h.b16 %v416
        %v610 = vunpack.c.l.b16 %v417
        %v611 = vunpack.c.h.b16 %v417
        %v612 = vunpack.c.l.b16 %v418
        %v613 = vunpack.c.h.b16 %v418
        %v614 = vunpack.c.l.b16 %v419
        %v615 = vunpack.c.h.b16 %v419
        %v616 = vunpack.c.l.b16 %v420
        %v617 = vunpack.c.h.b16 %v420
        %v618 = vunpack.c.l.b16 %v421
        %v619 = vunpack.c.h.b16 %v421
        %v620 = vunpack.c.l.b16 %v422
        %v621 = vunpack.c.h.b16 %v422
        %v622 = vunpack.c.l.b16 %v423
        %v623 = vunpack.c.h.b16 %v423
        %v624 = vunpack.c.l.b16 %v424
        %v625 = vunpack.c.h.b16 %v424
        %v626 = vunpack.c.l.b16 %v425
        %v627 = vunpack.c.h.b16 %v425
        %v628 = vunpack.c.l.b16 %v426
        %v629 = vunpack.c.h.b16 %v426
        %v630 = vunpack.c.l.b16 %v427
        %v631 = vunpack.c.h.b16 %v427
        %v632 = vunpack.c.l.b16 %v428
        %v633 = vunpack.c.h.b16 %v428
        %v634 = vunpack.c.l.b16 %v429
        %v635 = vunpack.c.h.b16 %v429
        %v636 = vunpack.c.l.b16 %v430
        %v637 = vunpack.c.h.b16 %v430
        %v638 = vunpack.c.l.b16 %v431
        %v639 = vunpack.c.h.b16 %v431
        %v640 = vunpack.c.l.b16 %v432
        %v641 = vunpack.c.h.b16 %v432
        %v642 = vunpack.c.l.b16 %v433
        %v643 = vunpack.c.h.b16 %v433
        %v644 = vunpack.c.l.b16 %v434
        %v645 = vunpack.c.h.b16 %v434
        %v646 = vunpack.c.l.b16 %v435
        %v647 = vunpack.c.h.b16 %v435
        %v648 = vpack.c.b16 %v524, %v520
        %v649 = vpack.c.b16 %v525, %v521
        %v650 = vpack.c.b16 %v526, %v522
        %v651 = vpack.c.b16 %v527, %v523
        %v652 = vpack.c.b16 %v532, %v528
        %v653 = vpack.c.b16 %v533, %v529
        %v654 = vpack.c.b16 %v534, %v530
        %v655 = vpack.c.b16 %v535, %v531
        %v656 = vpack.c.b16 %v540, %v536
        %v657 = vpack.c.b16 %v541, %v537
        %v658 = vpack.c.b16 %v542, %v538
        %v659 = vpack.c.b16 %v543, %v539
        %v660 = vpack.c.b16 %v548, %v544
        %v661 = vpack.c.b16 %v549, %v545
        %v662 = vpack.c.b16 %v550, %v546
        %v663 = vpack.c.b16 %v551, %v547
        %v664 = vpack.c.b16 %v556, %v552
        %v665 = vpack.c.b16 %v557, %v553
        %v666 = vpack.c.b16 %v558, %v554
        %v667 = vpack.c.b16 %v559, %v555
        %v668 = vpack.c.b16 %v564, %v560
        %v669 = vpack.c.b16 %v565, %v561
        %v670 = vpack.c.b16 %v566, %v562
        %v671 = vpack.c.b16 %v567, %v563
        %v672 = vpack.c.b16 %v572, %v568
        %v673 = vpack.c.b16 %v573, %v569
        %v674 = vpack.c.b16 %v574, %v570
        %v675 = vpack.c.b16 %v575, %v571
        %v676 = vpack.c.b16 %v580, %v576
        %v677 = vpack.c.b16 %v581, %v577
        %v678 = vpack.c.b16 %v582, %v578
        %v679 = vpack.c.b16 %v583, %v579
        %v680 = vpack.c.b16 %v588, %v584
        %v681 = vpack.c.b16 %v589, %v585
        %v682 = vpack.c.b16 %v590, %v586
        %v683 = vpack.c.b16 %v591, %v587
        %v684 = vpack.c.b16 %v596, %v592
        %v685 = vpack.c.b16 %v597, %v593
        %v686 = vpack.c.b16 %v598, %v594
        %v687 = vpack.c.b16 %v599, %v595
        %v688 = vpack.c.b16 %v604, %v600
        %v689 = vpack.c.b16 %v605, %v601
        %v690 = vpack.c.b16 %v606, %v602
        %v691 = vpack.c.b16 %v607, %v603
        %v692 = vpack.c.b16 %v612, %v608
        %v693 = vpack.c.b16 %v613, %v609
        %v694 = vpack.c.b16 %v614, %v610
        %v695 = vpack.c.b16 %v615, %v611
        %v696 = vpack.c.b16 %v620, %v616
        %v697 = vpack.c.b16 %v621, %v617
        %v698 = vpack.c.b16 %v622, %v618
        %v699 = vpack.c.b16 %v623, %v619
        %v700 = vpack.c.b16 %v628, %v624
        %v701 = vpack.c.b16 %v629, %v625
        %v702 = vpack.c.b16 %v630, %v626
        %v703 = vpack.c.b16 %v631, %v627
        %v704 = vpack.c.b16 %v636, %v632
        %v705 = vpack.c.b16 %v637, %v633
        %v706 = vpack.c.b16 %v638, %v634
        %v707 = vpack.c.b16 %v639, %v635
        %v708 = vpack.c.b16 %v644, %v640
        %v709 = vpack.c.b16 %v645, %v641
        %v710 = vpack.c.b16 %v646, %v642
        %v711 = vpack.c.b16 %v647, %v643
        %776 = vmatpush.bf16.msra.mxu0 %v676
        %777 = vmatpush.bf16.msra.mxu0 %v672
        %778 = vmatpush.bf16.msra.mxu0 %v668
        %779 = vmatpush.bf16.msra.mxu0 %v664
        %780 = vmatpush.bf16.msra.mxu0 %v660
        %781 = vmatpush.bf16.msra.mxu0 %v656
        %782 = vmatpush.bf16.msra.mxu0 %v652
        %783 = vmatpush.bf16.msra.mxu0 %v648
        %784 = vmatmul.bf16.gmra.mxu0 %v448
        %v785 = vpop.f32.mrf.mxu0
        %v786 = vadd.f32 0.0, %v785
        %v787 = vpop.f32.mrf.mxu0
        %v788 = vadd.f32 0.0, %v787
        %789 = vmatmul.bf16.gmra.mxu0 %v450
        %v790 = vpop.f32.mrf.mxu0
        %v791 = vadd.f32 0.0, %v790
        %v792 = vpop.f32.mrf.mxu0
        %v793 = vadd.f32 0.0, %v792
        %794 = vdwg.mxu0
        %795 = vmatpush.bf16.msra.mxu0 %v708
        %796 = vmatpush.bf16.msra.mxu0 %v704
        %797 = vmatpush.bf16.msra.mxu0 %v700
        %798 = vmatpush.bf16.msra.mxu0 %v696
        %799 = vmatpush.bf16.msra.mxu0 %v692
        %800 = vmatpush.bf16.msra.mxu0 %v688
        %801 = vmatpush.bf16.msra.mxu0 %v684
        %802 = vmatpush.bf16.msra.mxu0 %v680
        %803 = vmatmul.bf16.gmra.mxu0 %v449
        %v804 = vpop.f32.mrf.mxu0
        %v805 = vadd.f32 %v786, %v804
        %v806 = vpop.f32.mrf.mxu0
        %v807 = vadd.f32 %v788, %v806
        %808 = vmatmul.bf16.gmra.mxu0 %v451
        %v809 = vpop.f32.mrf.mxu0
        %v810 = vadd.f32 %v791, %v809
        %v811 = vpop.f32.mrf.mxu0
        %v812 = vadd.f32 %v793, %v811
        %813 = vdwg.mxu0
        %814 = vmatpush.bf16.msra.mxu0 %v677
        %815 = vmatpush.bf16.msra.mxu0 %v673
        %816 = vmatpush.bf16.msra.mxu0 %v669
        %817 = vmatpush.bf16.msra.mxu0 %v665
        %818 = vmatpush.bf16.msra.mxu0 %v661
        %819 = vmatpush.bf16.msra.mxu0 %v657
        %820 = vmatpush.bf16.msra.mxu0 %v653
        %821 = vmatpush.bf16.msra.mxu0 %v649
        %822 = vmatmul.bf16.gmra.mxu0 %v448
        %v823 = vpop.f32.mrf.mxu0
        %v824 = vadd.f32 0.0, %v823
        %v825 = vpop.f32.mrf.mxu0
        %v826 = vadd.f32 0.0, %v825
        %827 = vmatmul.bf16.gmra.mxu0 %v450
        %v828 = vpop.f32.mrf.mxu0
        %v829 = vadd.f32 0.0, %v828
        %v830 = vpop.f32.mrf.mxu0
        %v831 = vadd.f32 0.0, %v830
        %832 = vdwg.mxu0
        %833 = vmatpush.bf16.msra.mxu0 %v709
        %834 = vmatpush.bf16.msra.mxu0 %v705
        %835 = vmatpush.bf16.msra.mxu0 %v701
        %836 = vmatpush.bf16.msra.mxu0 %v697
        %837 = vmatpush.bf16.msra.mxu0 %v693
        %838 = vmatpush.bf16.msra.mxu0 %v689
        %839 = vmatpush.bf16.msra.mxu0 %v685
        %840 = vmatpush.bf16.msra.mxu0 %v681
        %841 = vmatmul.bf16.gmra.mxu0 %v449
        %v842 = vpop.f32.mrf.mxu0
        %v843 = vadd.f32 %v824, %v842
        %v844 = vpop.f32.mrf.mxu0
        %v845 = vadd.f32 %v826, %v844
        %846 = vmatmul.bf16.gmra.mxu0 %v451
        %v847 = vpop.f32.mrf.mxu0
        %v848 = vadd.f32 %v829, %v847
        %v849 = vpop.f32.mrf.mxu0
        %v850 = vadd.f32 %v831, %v849
        %851 = vdwg.mxu0
        %852 = vmatpush.bf16.msra.mxu0 %v678
        %853 = vmatpush.bf16.msra.mxu0 %v674
        %854 = vmatpush.bf16.msra.mxu0 %v670
        %855 = vmatpush.bf16.msra.mxu0 %v666
        %856 = vmatpush.bf16.msra.mxu0 %v662
        %857 = vmatpush.bf16.msra.mxu0 %v658
        %858 = vmatpush.bf16.msra.mxu0 %v654
        %859 = vmatpush.bf16.msra.mxu0 %v650
        %860 = vmatmul.bf16.gmra.mxu0 %v448
        %v861 = vpop.f32.mrf.mxu0
        %v862 = vadd.f32 0.0, %v861
        %v863 = vpop.f32.mrf.mxu0
        %v864 = vadd.f32 0.0, %v863
        %865 = vmatmul.bf16.gmra.mxu0 %v450
        %v866 = vpop.f32.mrf.mxu0
        %v867 = vadd.f32 0.0, %v866
        %v868 = vpop.f32.mrf.mxu0
        %v869 = vadd.f32 0.0, %v868
        %870 = vdwg.mxu0
        %871 = vmatpush.bf16.msra.mxu0 %v710
        %872 = vmatpush.bf16.msra.mxu0 %v706
        %873 = vmatpush.bf16.msra.mxu0 %v702
        %874 = vmatpush.bf16.msra.mxu0 %v698
        %875 = vmatpush.bf16.msra.mxu0 %v694
        %876 = vmatpush.bf16.msra.mxu0 %v690
        %877 = vmatpush.bf16.msra.mxu0 %v686
        %878 = vmatpush.bf16.msra.mxu0 %v682
        %879 = vmatmul.bf16.gmra.mxu0 %v449
        %v880 = vpop.f32.mrf.mxu0
        %v881 = vadd.f32 %v862, %v880
        %v882 = vpop.f32.mrf.mxu0
        %v883 = vadd.f32 %v864, %v882
        %884 = vmatmul.bf16.gmra.mxu0 %v451
        %v885 = vpop.f32.mrf.mxu0
        %v886 = vadd.f32 %v867, %v885
        %v887 = vpop.f32.mrf.mxu0
        %v888 = vadd.f32 %v869, %v887
        %889 = vdwg.mxu0
        %890 = vmatpush.bf16.msra.mxu0 %v679
        %891 = vmatpush.bf16.msra.mxu0 %v675
        %892 = vmatpush.bf16.msra.mxu0 %v671
        %893 = vmatpush.bf16.msra.mxu0 %v667
        %894 = vmatpush.bf16.msra.mxu0 %v663
        %895 = vmatpush.bf16.msra.mxu0 %v659
        %896 = vmatpush.bf16.msra.mxu0 %v655
        %897 = vmatpush.bf16.msra.mxu0 %v651
        %898 = vmatmul.bf16.gmra.mxu0 %v448
        %v899 = vpop.f32.mrf.mxu0
        %v900 = vadd.f32 0.0, %v899
        %v901 = vpop.f32.mrf.mxu0
        %v902 = vadd.f32 0.0, %v901
        %903 = vmatmul.bf16.gmra.mxu0 %v450
        %v904 = vpop.f32.mrf.mxu0
        %v905 = vadd.f32 0.0, %v904
        %v906 = vpop.f32.mrf.mxu0
        %v907 = vadd.f32 0.0, %v906
        %908 = vdwg.mxu0
        %909 = vmatpush.bf16.msra.mxu0 %v711
        %910 = vmatpush.bf16.msra.mxu0 %v707
        %911 = vmatpush.bf16.msra.mxu0 %v703
        %912 = vmatpush.bf16.msra.mxu0 %v699
        %913 = vmatpush.bf16.msra.mxu0 %v695
        %914 = vmatpush.bf16.msra.mxu0 %v691
        %915 = vmatpush.bf16.msra.mxu0 %v687
        %916 = vmatpush.bf16.msra.mxu0 %v683
        %917 = vmatmul.bf16.gmra.mxu0 %v449
        %v918 = vpop.f32.mrf.mxu0
        %v919 = vadd.f32 %v900, %v918
        %v920 = vpop.f32.mrf.mxu0
        %v921 = vadd.f32 %v902, %v920
        %922 = vmatmul.bf16.gmra.mxu0 %v451
        %v923 = vpop.f32.mrf.mxu0
        %v924 = vadd.f32 %v905, %v923
        %v925 = vpop.f32.mrf.mxu0
        %v926 = vadd.f32 %v907, %v925
        %927 = vdwg.mxu0
        %v928 = vpack.c.bf16 %v843, %v805
        %v929 = vpack.c.bf16 %v919, %v881
        %v930 = vpack.c.bf16 %v845, %v807
        %v931 = vpack.c.bf16 %v921, %v883
        %v932 = vpack.c.bf16 %v848, %v810
        %v933 = vpack.c.bf16 %v924, %v886
        %v934 = vpack.c.bf16 %v850, %v812
        %v935 = vpack.c.bf16 %v926, %v888
        %936 = vst [vmem:[%s242] sm:$0xff] %v928
        %937 = vst [vmem:[%s242 + $0x8] sm:$0xff] %v929
        %938 = vst [vmem:[%s242 + $0x10] sm:$0xff] %v930
        %939 = vst [vmem:[%s242 + $0x18] sm:$0xff] %v931
        %940 = vst [vmem:[%s242 + $0x20] sm:$0xff] %v932
        %941 = vst [vmem:[%s242 + $0x28] sm:$0xff] %v933
        %942 = vst [vmem:[%s242 + $0x30] sm:$0xff] %v934
        %943 = vst [vmem:[%s242 + $0x38] sm:$0xff] %v935
        %s944 = sand.u32 %s114, 1
        %s945 = scalar_lea.sflag [#allocation5], %s944
        %s946 = sand.u32 %s114, 1
        %s947 = smul.addr %s946, 64
        %s948 = scalar_lea.vmem [#allocation9], %s947
        // Predicated region
        $region49: #{tpu_custom_call.1} parent=31 // pred_check
          %p949 = pneg %p124
        $region50: #{tpu_custom_call.1} parent=31 // pred_check_branch
          %951 = sbr.rel (%p949) target = $region52
        $region51: #{tpu_custom_call.1} parent=31 // pred_region
          %s952 = smul.u32 4, %s23
          %s953 = smul.u32 4, %s24
          %955 = vsyncadd %s945, 0
          %s956 = smul.addr %s952, 8
          %s957 = sadd.s32 %s953, %s956
          %s958 = smul.addr %s957, 4
          %s959 = scalar_lea.hbm %s3, %s958
          %s960 = sshll.u32 %s948, 4
          %s961 = int_to_ptr.vmem [resolvable:$true] %s960
          %s962 = sshll.u32 %s959, 4
          %s963 = int_to_ptr.hbm [resolvable:$true] %s962
          %968 = dma.vmem_to_hbm [thread:$0]  %s961, 1024, %s963, %s945, 256, 512, 16
        $region52: #{tpu_custom_call.1} parent=31 // pred_fallthru
          _
      $region32: #{tpu_custom_call.1} parent=5 // pred_fallthru
        _
      %p969 = scmp.le.s32.totalorder 2, %s14
      // Predicated region
      $region53: #{tpu_custom_call.1} parent=5 // pred_check
        %p970 = pneg %p969
      $region54: #{tpu_custom_call.1} parent=5 // pred_check_branch
        %972 = sbr.rel (%p970) target = $region56
      $region55: #{tpu_custom_call.1} parent=5 // pred_region
        %s973 = ssub.s32 %s14, 2
        // Predicated region
        $region57: #{tpu_custom_call.1} parent=55 // pred_check
          %p974 = pneg %p130
        $region58: #{tpu_custom_call.1} parent=55 // pred_check_branch
          %976 = sbr.rel (%p974) target = $region60
        $region59: #{tpu_custom_call.1} parent=55 // pred_region
          %s977 = sand.u32 %s115, 1
          %s978 = scalar_lea.sflag [#allocation5], %s977
          %s979 = sand.u32 %s115, 1
          %s980 = smul.addr %s979, 64
          %s981 = scalar_lea.vmem [#allocation9], %s980
          %983 = dma.done %s978, 1024
        $region60: #{tpu_custom_call.1} parent=55 // pred_fallthru
          _
      $region56: #{tpu_custom_call.1} parent=5 // pred_fallthru
        _
    $region6: #{tpu_custom_call.1} parent=1 // loop_footer
      %s18 = sadd.s32 1, %s14
    $region7: #{tpu_custom_call.1} parent=1 // loop_footer_branch
      %13 = sbr.rel target = $region3
    $region8: #{tpu_custom_call.1} parent=1 // loop_exit
      _
    %984 = vsyncpa [#allocation4], 1
    %s985 = scalar_lea.sflag [#allocation4], 1
    %986 = vsyncpa %s985, 1
    %987 = vsyncpa [#allocation7], 1
    %988 = vsyncpa [#allocation5], 1
    %s989 = scalar_lea.sflag [#allocation5], 1
    %990 = vsyncpa %s989, 1

</llo_original>
